<compile_context>
chip_gen: v5e
topology: v5e:2x2
jax: 0.10.0
libtpu: 0.0.40
codegen_flags: <defaults>
</compile_context>

<pallas_src>
import functools
from typing import NamedTuple

import jax
import jax.numpy as jnp
from jax.experimental import pallas as pl
from jax.experimental.pallas import tpu as pltpu


def _round_up(n, m):
    return ((n + m - 1) // m) * m


class GRUConfig(NamedTuple):
    I: int
    H: int
    O: int
    Ip: int
    Hp: int
    Op: int


def _gru_kernel(x_ref, h_ref, wx_ref, whru_ref, wch_ref, b3_ref,
                wo_ref, bo_ref, out_ref, hnew_ref):
    cdt = wx_ref.dtype                     # matmul-input dtype (bf16 by default)
    x = x_ref[...].astype(cdt)
    h32 = h_ref[...].astype(jnp.float32)   # state / elementwise math stays f32
    h = h32.astype(cdt)
    Hp = h_ref.shape[1]

    # Fused x-side: x @ [Wrx|Wux|Wcx] + [br|bu|bc]   -> (TB, 3*Hp), f32 accum.
    gx = jnp.dot(x, wx_ref[...], preferred_element_type=jnp.float32) + b3_ref[...]
    # Fused h-side (reset/update): h @ [Wrh|Wuh]     -> (TB, 2*Hp), f32 accum.
    gh = jnp.dot(h, whru_ref[...], preferred_element_type=jnp.float32)

    def _sigmoid(z):
        # One EUP tanh push per element instead of exp + reciprocal.
        return 0.5 * (jnp.tanh(0.5 * z) + 1.0)

    reset = _sigmoid(gx[:, :Hp] + gh[:, :Hp])
    update = _sigmoid(gx[:, Hp:2 * Hp] + gh[:, Hp:2 * Hp])

    # candidate = tanh(x @ Wcx + bc + (reset*h) @ Wch)
    cand = jnp.tanh(gx[:, 2 * Hp:] +
                    jnp.dot((reset * h32).astype(cdt), wch_ref[...],
                            preferred_element_type=jnp.float32))

    h_new = (1.0 - update) * cand + update * h32
    hnew_ref[...] = h_new.astype(hnew_ref.dtype)

    out_ref[...] = (jnp.dot(h_new.astype(cdt), wo_ref[...],
                            preferred_element_type=jnp.float32)
                    + bo_ref[...]).astype(out_ref.dtype)


def prepare_params(params, input_size, hidden_size, output_size,
                   weight_dtype=jnp.bfloat16):
    """One-time weight prep: split the concat-Linear weights, fuse gates,
    transpose to (in, out), zero-pad feature dims to multiples of 128, cast to
    weight_dtype (bf16 by default).  Returns (weights_pytree, static config)."""
    I, H, O = int(input_size), int(hidden_size), int(output_size)
    Ip, Hp, Op = _round_up(I, 128), _round_up(H, 128), _round_up(O, 128)

    def pad2(a, r, c):
        return jnp.pad(a, ((0, r - a.shape[0]), (0, c - a.shape[1])))

    def pad1(a, n):
        return jnp.pad(a, (0, n - a.shape[0]))

    def split_t(W):  # PyTorch Linear weight is (out, in) over cat(x, h).
        return W[:, :I].T, W[:, I:].T

    Wrx, Wrh = split_t(params["Wr"])
    Wux, Wuh = split_t(params["Wu"])
    Wcx, Wch = split_t(params["Wc"])

    Wx = jnp.concatenate([pad2(Wrx, Ip, Hp), pad2(Wux, Ip, Hp),
                          pad2(Wcx, Ip, Hp)], axis=1).astype(weight_dtype)
    Wh_ru = jnp.concatenate([pad2(Wrh, Hp, Hp),
                             pad2(Wuh, Hp, Hp)], axis=1).astype(weight_dtype)
    Wch_p = pad2(Wch, Hp, Hp).astype(weight_dtype)
    b3 = jnp.concatenate([pad1(params["br"], Hp), pad1(params["bu"], Hp),
                          pad1(params["bc"], Hp)]
                         ).reshape(1, 3 * Hp).astype(jnp.float32)
    Wo = pad2(params["Wo"].T, Hp, Op).astype(weight_dtype)
    bo = pad1(params["bo"], Op).reshape(1, Op).astype(jnp.float32)

    weights = dict(Wx=Wx, Wh_ru=Wh_ru, Wch=Wch_p, b3=b3, Wo=Wo, bo=bo)
    return weights, GRUConfig(I=I, H=H, O=O, Ip=Ip, Hp=Hp, Op=Op)


def _pick_batch_tiling(batch):
    """Pad batch to a multiple of 8 and pick a per-generation batch tile."""
    kind = ""
    try:
        kind = jax.devices()[0].device_kind.lower()
    except Exception:
        pass
    # v5e's MXU is 4x128x128 -> TB=128; v6e/v7x 2x256x256 want TB=256.
    tb_max = 128 if ("v5 lite" in kind or "v5e" in kind) else 256
    bp = _round_up(batch, 8)
    if bp > tb_max:
        tb = tb_max
        bp = _round_up(bp, tb)
    else:
        tb = bp
    # Keep >=2 "parallel" tiles when possible so v7x's second TC isn't idle.
    if bp // tb == 1 and bp % 16 == 0:
        tb = bp // 2
    return bp, tb


@functools.partial(jax.jit, static_argnames=("cfg",))
def gru_rnn_forward(x, hidden, weights, cfg):
    """Pallas-backed equivalent of GRURNN.forward(x, hidden) -> (out, h_new)."""
    B = x.shape[0]
    I, H, O = cfg.I, cfg.H, cfg.O
    Ip, Hp, Op = cfg.Ip, cfg.Hp, cfg.Op

    Bp, TB = _pick_batch_tiling(B)

    xp = jnp.pad(x, ((0, Bp - B), (0, Ip - I)))
    hp = jnp.pad(hidden.astype(jnp.float32), ((0, Bp - B), (0, Hp - H)))

    wbytes = jnp.dtype(weights["Wx"].dtype).itemsize
    weight_elems = Ip * 3 * Hp + Hp * 2 * Hp + Hp * Hp + Hp * Op
    resident = weight_elems * wbytes + (3 * Hp + Op) * 4      # single-buffered
    io_tiles = 2 * TB * (Ip + 2 * Hp + Op) * 4                # double-buffered io
    temporaries = TB * (3 * Hp + 2 * Hp + 4 * Hp) * 4         # gx, gh, gates (f32)
    vmem_limit = int(min(100 * 2**20,
                         max(16 * 2**20, 2 * (resident + io_tiles + temporaries))))

    cost = pl.CostEstimate(
        flops=2 * Bp * weight_elems,
        transcendentals=3 * Bp * Hp,
        bytes_accessed=int(weight_elems * wbytes + (3 * Hp + Op) * 4
                           + Bp * (Ip + Hp) * 4 + Bp * (Op + Hp) * 4),
    )

    def resident_spec(shape):
        # Constant block: single-buffered, stays VMEM-resident across the grid.
        return pl.BlockSpec(shape, lambda i: (0, 0), pipeline_mode=pl.Buffered(1))

    grid = (Bp // TB,)
    out_p, hnew_p = pl.pallas_call(
        _gru_kernel,
        out_shape=(jax.ShapeDtypeStruct((Bp, Op), x.dtype),
                   jax.ShapeDtypeStruct((Bp, Hp), jnp.float32)),
        grid=grid,
        in_specs=[
            pl.BlockSpec((TB, Ip), lambda i: (i, 0)),     # x batch tile
            pl.BlockSpec((TB, Hp), lambda i: (i, 0)),     # h batch tile
            resident_spec((Ip, 3 * Hp)),                  # Wx  = [Wrx|Wux|Wcx]
            resident_spec((Hp, 2 * Hp)),                  # Whru= [Wrh|Wuh]
            resident_spec((Hp, Hp)),                      # Wch
            resident_spec((1, 3 * Hp)),                   # fused bias [br|bu|bc]
            resident_spec((Hp, Op)),                      # Wo
            resident_spec((1, Op)),                       # bo
        ],
        out_specs=(pl.BlockSpec((TB, Op), lambda i: (i, 0)),
                   pl.BlockSpec((TB, Hp), lambda i: (i, 0))),
        input_output_aliases={1: 1},                      # h in -> h_new out
        compiler_params=pltpu.CompilerParams(
            dimension_semantics=("parallel",),
            vmem_limit_bytes=vmem_limit),
        cost_estimate=cost,
    )(xp, hp, weights["Wx"], weights["Wh_ru"], weights["Wch"],
      weights["b3"], weights["Wo"], weights["bo"])

    return out_p[:B, :O], hnew_p[:B, :H].astype(hidden.dtype)


def _init_params(key, input_size, hidden_size, output_size):
    """Deterministic init mimicking nn.Linear default (U[-1/sqrt(fan_in), +])."""
    ks = jax.random.split(key, 8)

    def lin(kw, kb, fan_in, fan_out):
        bound = 1.0 / jnp.sqrt(fan_in)
        W = jax.random.uniform(kw, (fan_out, fan_in), jnp.float32, -bound, bound)
        b = jax.random.uniform(kb, (fan_out,), jnp.float32, -bound, bound)
        return W, b

    Wr, br = lin(ks[0], ks[1], input_size + hidden_size, hidden_size)
    Wu, bu = lin(ks[2], ks[3], input_size + hidden_size, hidden_size)
    Wc, bc = lin(ks[4], ks[5], input_size + hidden_size, hidden_size)
    Wo, bo = lin(ks[6], ks[7], hidden_size, output_size)
    return dict(Wr=Wr, br=br, Wu=Wu, bu=bu, Wc=Wc, bc=bc, Wo=Wo, bo=bo)


def _reference(x, h, p):
    hi = jax.lax.Precision.HIGHEST
    combined = jnp.concatenate([x, h], axis=1)
    reset = jax.nn.sigmoid(jnp.dot(combined, p["Wr"].T, precision=hi) + p["br"])
    update = jax.nn.sigmoid(jnp.dot(combined, p["Wu"].T, precision=hi) + p["bu"])
    combined_reset = jnp.concatenate([x, reset * h], axis=1)
    cand = jnp.tanh(jnp.dot(combined_reset, p["Wc"].T, precision=hi) + p["bc"])
    h_new = (1.0 - update) * cand + update * h
    out = jnp.dot(h_new, p["Wo"].T, precision=hi) + p["bo"]
    return out, h_new


if __name__ == "__main__":
    batch, input_size, hidden_size, output_size = 4, 16, 32, 8

    key = jax.random.PRNGKey(0)
    k_params, k_x, k_h = jax.random.split(key, 3)
    params = _init_params(k_params, input_size, hidden_size, output_size)

    x = jax.random.normal(k_x, (batch, input_size), jnp.float32)
    hidden = jax.random.normal(k_h, (batch, hidden_size), jnp.float32)

    out_ref, h_ref = _reference(x, hidden, params)

    # f32-weight path: tight check against the pure-JAX reference.
    w_f32, cfg = prepare_params(params, input_size, hidden_size, output_size,
                                weight_dtype=jnp.float32)
    out32, h32 = jax.block_until_ready(gru_rnn_forward(x, hidden, w_f32, cfg=cfg))
    assert out32.shape == (batch, output_size) and h32.shape == (batch, hidden_size)
    assert jnp.allclose(out32, out_ref, atol=1e-4, rtol=1e-4)
    assert jnp.allclose(h32, h_ref, atol=1e-4, rtol=1e-4)

    # bf16-weight path (default, MXU-fast): looser tolerance vs f32 reference.
    w_bf16, cfg = prepare_params(params, input_size, hidden_size, output_size)
    out16, h16 = jax.block_until_ready(gru_rnn_forward(x, hidden, w_bf16, cfg=cfg))
    assert out16.shape == (batch, output_size) and h16.shape == (batch, hidden_size)
    assert jnp.allclose(out16, out_ref, atol=2e-2, rtol=2e-2)
    assert jnp.allclose(h16, h_ref, atol=2e-2, rtol=2e-2)

    print("KERNEL_OK")
</pallas_src>

<mosaic_0001>
module attributes {stable_mosaic.version = 11 : i64} {
  func.func @_gru_kernel(%arg0: i32, %arg1: memref<8x128xf32, #tpu.memory_space<vmem>>, %arg2: memref<8x128xf32, #tpu.memory_space<vmem>>, %arg3: memref<128x384xf32, #tpu.memory_space<vmem>>, %arg4: memref<128x256xf32, #tpu.memory_space<vmem>>, %arg5: memref<128x128xf32, #tpu.memory_space<vmem>>, %arg6: memref<1x384xf32, #tpu.memory_space<vmem>>, %arg7: memref<128x128xf32, #tpu.memory_space<vmem>>, %arg8: memref<1x128xf32, #tpu.memory_space<vmem>>, %arg9: memref<8x128xf32, #tpu.memory_space<vmem>>, %arg10: memref<8x128xf32, #tpu.memory_space<vmem>>) attributes {dimension_semantics = [#tpu.dimension_semantics<parallel>], iteration_bounds = array<i64: 1>, scalar_prefetch = 0 : i64, scratch_operands = 0 : i64, tpu.core_type = #tpu.core_type<tc>, window_params = [{transform_indices = @transform_0, window_bounds = array<i64: 8, 128>}, {transform_indices = @transform_1, window_bounds = array<i64: 8, 128>}, {pipeline_mode = #tpu.pipeline_mode<synchronous>, transform_indices = @transform_2, window_bounds = array<i64: 128, 384>}, {pipeline_mode = #tpu.pipeline_mode<synchronous>, transform_indices = @transform_3, window_bounds = array<i64: 128, 256>}, {pipeline_mode = #tpu.pipeline_mode<synchronous>, transform_indices = @transform_4, window_bounds = array<i64: 128, 128>}, {pipeline_mode = #tpu.pipeline_mode<synchronous>, transform_indices = @transform_5, window_bounds = array<i64: 1, 384>}, {pipeline_mode = #tpu.pipeline_mode<synchronous>, transform_indices = @transform_6, window_bounds = array<i64: 128, 128>}, {pipeline_mode = #tpu.pipeline_mode<synchronous>, transform_indices = @transform_7, window_bounds = array<i64: 1, 128>}, {transform_indices = @transform_8, window_bounds = array<i64: 8, 128>}, {transform_indices = @transform_9, window_bounds = array<i64: 8, 128>}]} {
    %c0 = arith.constant 0 : index
    %c0_0 = arith.constant 0 : index
    %0 = vector.load %arg1[%c0, %c0_0] : memref<8x128xf32, #tpu.memory_space<vmem>>, vector<8x128xf32>
    %c0_1 = arith.constant 0 : index
    %c0_2 = arith.constant 0 : index
    %1 = vector.load %arg2[%c0_1, %c0_2] : memref<8x128xf32, #tpu.memory_space<vmem>>, vector<8x128xf32>
    %c0_3 = arith.constant 0 : index
    %c0_4 = arith.constant 0 : index
    %2 = vector.load %arg3[%c0_3, %c0_4] : memref<128x384xf32, #tpu.memory_space<vmem>>, vector<128x384xf32>
    %cst = arith.constant dense<0.000000e+00> : vector<8x384xf32>
    %3 = tpu.matmul %0, %2, %cst {dimension_numbers = #tpu.dot_dimension_numbers<[1], [0], [0], [1], [0, 0, 1, 1], [], []>} : vector<8x128xf32>, vector<128x384xf32>, vector<8x384xf32> -> vector<8x384xf32>
    %c0_5 = arith.constant 0 : index
    %c0_6 = arith.constant 0 : index
    %4 = vector.load %arg6[%c0_5, %c0_6] : memref<1x384xf32, #tpu.memory_space<vmem>>, vector<1x384xf32>
    %5 = vector.broadcast %4 : vector<1x384xf32> to vector<8x384xf32>
    %6 = arith.addf %3, %5 : vector<8x384xf32>
    %c0_7 = arith.constant 0 : index
    %c0_8 = arith.constant 0 : index
    %7 = vector.load %arg4[%c0_7, %c0_8] : memref<128x256xf32, #tpu.memory_space<vmem>>, vector<128x256xf32>
    %cst_9 = arith.constant dense<0.000000e+00> : vector<8x256xf32>
    %8 = tpu.matmul %1, %7, %cst_9 {dimension_numbers = #tpu.dot_dimension_numbers<[1], [0], [0], [1], [0, 0, 1, 1], [], []>} : vector<8x128xf32>, vector<128x256xf32>, vector<8x256xf32> -> vector<8x256xf32>
    %9 = vector.extract_strided_slice %6 {offsets = [0, 0], sizes = [8, 128], strides = [1, 1]} : vector<8x384xf32> to vector<8x128xf32>
    %10 = vector.extract_strided_slice %8 {offsets = [0, 0], sizes = [8, 128], strides = [1, 1]} : vector<8x256xf32> to vector<8x128xf32>
    %11 = arith.addf %9, %10 : vector<8x128xf32>
    %cst_10 = arith.constant 5.000000e-01 : f32
    %12 = vector.broadcast %cst_10 : f32 to vector<8x128xf32>
    %13 = arith.mulf %12, %11 : vector<8x128xf32>
    %14 = math.tanh %13 : vector<8x128xf32>
    %cst_11 = arith.constant 1.000000e+00 : f32
    %15 = vector.broadcast %cst_11 : f32 to vector<8x128xf32>
    %16 = arith.addf %14, %15 : vector<8x128xf32>
    %cst_12 = arith.constant 5.000000e-01 : f32
    %17 = vector.broadcast %cst_12 : f32 to vector<8x128xf32>
    %18 = arith.mulf %17, %16 : vector<8x128xf32>
    %19 = vector.extract_strided_slice %6 {offsets = [0, 128], sizes = [8, 128], strides = [1, 1]} : vector<8x384xf32> to vector<8x128xf32>
    %20 = vector.extract_strided_slice %8 {offsets = [0, 128], sizes = [8, 128], strides = [1, 1]} : vector<8x256xf32> to vector<8x128xf32>
    %21 = arith.addf %19, %20 : vector<8x128xf32>
    %cst_13 = arith.constant 5.000000e-01 : f32
    %22 = vector.broadcast %cst_13 : f32 to vector<8x128xf32>
    %23 = arith.mulf %22, %21 : vector<8x128xf32>
    %24 = math.tanh %23 : vector<8x128xf32>
    %cst_14 = arith.constant 1.000000e+00 : f32
    %25 = vector.broadcast %cst_14 : f32 to vector<8x128xf32>
    %26 = arith.addf %24, %25 : vector<8x128xf32>
    %cst_15 = arith.constant 5.000000e-01 : f32
    %27 = vector.broadcast %cst_15 : f32 to vector<8x128xf32>
    %28 = arith.mulf %27, %26 : vector<8x128xf32>
    %29 = vector.extract_strided_slice %6 {offsets = [0, 256], sizes = [8, 128], strides = [1, 1]} : vector<8x384xf32> to vector<8x128xf32>
    %30 = arith.mulf %18, %1 : vector<8x128xf32>
    %c0_16 = arith.constant 0 : index
    %c0_17 = arith.constant 0 : index
    %31 = vector.load %arg5[%c0_16, %c0_17] : memref<128x128xf32, #tpu.memory_space<vmem>>, vector<128x128xf32>
    %cst_18 = arith.constant dense<0.000000e+00> : vector<8x128xf32>
    %32 = tpu.matmul %30, %31, %cst_18 {dimension_numbers = #tpu.dot_dimension_numbers<[1], [0], [0], [1], [0, 0, 1, 1], [], []>} : vector<8x128xf32>, vector<128x128xf32>, vector<8x128xf32> -> vector<8x128xf32>
    %33 = arith.addf %29, %32 : vector<8x128xf32>
    %34 = math.tanh %33 : vector<8x128xf32>
    %cst_19 = arith.constant 1.000000e+00 : f32
    %35 = vector.broadcast %cst_19 : f32 to vector<8x128xf32>
    %36 = arith.subf %35, %28 : vector<8x128xf32>
    %37 = arith.mulf %36, %34 : vector<8x128xf32>
    %38 = arith.mulf %28, %1 : vector<8x128xf32>
    %39 = arith.addf %37, %38 : vector<8x128xf32>
    %c0_20 = arith.constant 0 : index
    %c0_21 = arith.constant 0 : index
    %40 = vector.load %arg10[%c0_20, %c0_21] : memref<8x128xf32, #tpu.memory_space<vmem>>, vector<8x128xf32>
    tpu.vector_store %arg10[%c0_20, %c0_21], %39 {strides = array<i32>} : memref<8x128xf32, #tpu.memory_space<vmem>>, vector<8x128xf32>,
    %c0_22 = arith.constant 0 : index
    %c0_23 = arith.constant 0 : index
    %41 = vector.load %arg7[%c0_22, %c0_23] : memref<128x128xf32, #tpu.memory_space<vmem>>, vector<128x128xf32>
    %cst_24 = arith.constant dense<0.000000e+00> : vector<8x128xf32>
    %42 = tpu.matmul %39, %41, %cst_24 {dimension_numbers = #tpu.dot_dimension_numbers<[1], [0], [0], [1], [0, 0, 1, 1], [], []>} : vector<8x128xf32>, vector<128x128xf32>, vector<8x128xf32> -> vector<8x128xf32>
    %c0_25 = arith.constant 0 : index
    %c0_26 = arith.constant 0 : index
    %43 = vector.load %arg8[%c0_25, %c0_26] : memref<1x128xf32, #tpu.memory_space<vmem>>, vector<1x128xf32>
    %44 = vector.broadcast %43 : vector<1x128xf32> to vector<8x128xf32>
    %45 = arith.addf %42, %44 : vector<8x128xf32>
    %c0_27 = arith.constant 0 : index
    %c0_28 = arith.constant 0 : index
    %46 = vector.load %arg9[%c0_27, %c0_28] : memref<8x128xf32, #tpu.memory_space<vmem>>, vector<8x128xf32>
    tpu.vector_store %arg9[%c0_27, %c0_28], %45 {strides = array<i32>} : memref<8x128xf32, #tpu.memory_space<vmem>>, vector<8x128xf32>,
    return
  }
  func.func @transform_0(%arg0: i32) -> (i32, i32) {
    %c0_i32 = arith.constant 0 : i32
    %c0_i32_0 = arith.constant 0 : i32
    return %arg0, %c0_i32 : i32, i32
  }
  func.func @transform_1(%arg0: i32) -> (i32, i32) {
    %c0_i32 = arith.constant 0 : i32
    %c0_i32_0 = arith.constant 0 : i32
    return %arg0, %c0_i32 : i32, i32
  }
  func.func @transform_2(%arg0: i32) -> (i32, i32) {
    %c0_i32 = arith.constant 0 : i32
    %c0_i32_0 = arith.constant 0 : i32
    %c0_i32_1 = arith.constant 0 : i32
    return %c0_i32, %c0_i32_0 : i32, i32
  }
  func.func @transform_3(%arg0: i32) -> (i32, i32) {
    %c0_i32 = arith.constant 0 : i32
    %c0_i32_0 = arith.constant 0 : i32
    %c0_i32_1 = arith.constant 0 : i32
    return %c0_i32, %c0_i32_0 : i32, i32
  }
  func.func @transform_4(%arg0: i32) -> (i32, i32) {
    %c0_i32 = arith.constant 0 : i32
    %c0_i32_0 = arith.constant 0 : i32
    %c0_i32_1 = arith.constant 0 : i32
    return %c0_i32, %c0_i32_0 : i32, i32
  }
  func.func @transform_5(%arg0: i32) -> (i32, i32) {
    %c0_i32 = arith.constant 0 : i32
    %c0_i32_0 = arith.constant 0 : i32
    %c0_i32_1 = arith.constant 0 : i32
    return %c0_i32, %c0_i32_0 : i32, i32
  }
  func.func @transform_6(%arg0: i32) -> (i32, i32) {
    %c0_i32 = arith.constant 0 : i32
    %c0_i32_0 = arith.constant 0 : i32
    %c0_i32_1 = arith.constant 0 : i32
    return %c0_i32, %c0_i32_0 : i32, i32
  }
  func.func @transform_7(%arg0: i32) -> (i32, i32) {
    %c0_i32 = arith.constant 0 : i32
    %c0_i32_0 = arith.constant 0 : i32
    %c0_i32_1 = arith.constant 0 : i32
    return %c0_i32, %c0_i32_0 : i32, i32
  }
  func.func @transform_8(%arg0: i32) -> (i32, i32) {
    %c0_i32 = arith.constant 0 : i32
    %c0_i32_0 = arith.constant 0 : i32
    return %arg0, %c0_i32 : i32, i32
  }
  func.func @transform_9(%arg0: i32) -> (i32, i32) {
    %c0_i32 = arith.constant 0 : i32
    %c0_i32_0 = arith.constant 0 : i32
    return %arg0, %c0_i32 : i32, i32
  }
}

</mosaic_0001>

<llo_original>
// kernel: gru_rnn_forward.1
$region0: #{gru_rnn_forward.1}
  #allocation0 [shape = 'u32[]', space=smem, size = 0x4, offset = 0x4, fixed_abs, tag = 'smem constant byte address 0x4 - core index']
  #allocation1 [shape = 'u32[72,128]{1,0:T(1,128)}', space=vmem, size = 0x9000, scoped, tag = 'internal scratch']
  %s0 = inlined_call_operand.vmem [shape: f32[8,128], index: 0, kind: input, shape index: {}]
  %s1 = inlined_call_operand.vmem [shape: f32[8,128], index: 1, kind: input, shape index: {}, may-alias: {1,9}]
  %s2 = inlined_call_operand.hbm [shape: f32[128,384], index: 2, kind: input, shape index: {}]
  %s3 = inlined_call_operand.hbm [shape: f32[128,256], index: 3, kind: input, shape index: {}]
  %s4 = inlined_call_operand.hbm [shape: f32[128,128], index: 4, kind: input, shape index: {}]
  %s5 = inlined_call_operand.vmem [shape: f32[1,384], index: 5, kind: input, shape index: {}]
  %s6 = inlined_call_operand.hbm [shape: f32[128,128], index: 6, kind: input, shape index: {}]
  %s7 = inlined_call_operand.vmem [shape: f32[1,128], index: 7, kind: input, shape index: {}]
  %s8 = inlined_call_operand.vmem [shape: f32[8,128], index: 8, kind: output, shape index: {0}]
  %s9 = inlined_call_operand.vmem [shape: f32[8,128], index: 9, kind: output, shape index: {1}, may-alias: {1,9}]
  %10 = xla_tuple %s8, %s9
  %s11 = sld [smem:[#allocation0]]
  $region66: #{gru_rnn_forward.1} parent=0
    _
  %s13 = ssub.s32 1, %s11
  %s14 = scalar_select 0, %s13, %s11
  $region1: #{gru_rnn_forward.1} parent=0
    #allocation2 [shape = 'u8[196608]{0}', space=vmem, size = 0x30000, scoped, tag = 'input window, operand 2, single buffered']
    #allocation3 [shape = 's32[1]{0}', space=sflag, size = 0x4, scoped, tag = 'scoped memory for gru_rnn_forward.1']
    #allocation4 [shape = 'u8[131072]{0}', space=vmem, size = 0x20000, scoped, tag = 'input window, operand 3, single buffered']
    #allocation5 [shape = 's32[1]{0}', space=sflag, size = 0x4, scoped, tag = 'scoped memory for gru_rnn_forward.1']
    #allocation6 [shape = 'u8[65536]{0}', space=vmem, size = 0x10000, scoped, tag = 'input window, operand 4, single buffered']
    #allocation7 [shape = 'u8[65536]{0}', space=vmem, size = 0x10000, scoped, tag = 'input window, operand 6, single buffered']
    #allocation8 [shape = 's32[1]{0}', space=sflag, size = 0x4, scoped, tag = 'scoped memory for gru_rnn_forward.1']
    %15 = vsyncpa [#allocation3], 0
    %16 = vsyncpa [#allocation5], 0
    %17 = vsyncpa [#allocation8], 0
    // Predicated region
    $region2: #{gru_rnn_forward.1} parent=1 // pred_check
      _
    $region3: #{gru_rnn_forward.1} parent=1 // pred_check_branch
      %19 = sbr.rel (0) target = $region5
    $region4: #{gru_rnn_forward.1} parent=1 // pred_region
      _
    $region5: #{gru_rnn_forward.1} parent=1 // pred_fallthru
      _
    // Predicated region
    $region6: #{gru_rnn_forward.1} parent=1 // pred_check
      _
    $region7: #{gru_rnn_forward.1} parent=1 // pred_check_branch
      %21 = sbr.rel (0) target = $region9
    $region8: #{gru_rnn_forward.1} parent=1 // pred_region
      _
    $region9: #{gru_rnn_forward.1} parent=1 // pred_fallthru
      _
    // Predicated region
    $region10: #{gru_rnn_forward.1} parent=1 // pred_check
      _
    $region11: #{gru_rnn_forward.1} parent=1 // pred_check_branch
      %23 = sbr.rel (0) target = $region13
    $region12: #{gru_rnn_forward.1} parent=1 // pred_region
      %25 = vsyncadd [#allocation3], 0
      %s26 = sshll.u32 %s2, 4
      %s27 = int_to_ptr.hbm [resolvable:$true] %s26
      %s28 = sshll.u32 [#allocation2], 4
      %s29 = int_to_ptr.vmem [resolvable:$true] %s28
      %34 = dma.hbm_to_vmem [thread:$0]  %s27, 6144, %s29, [#allocation3], 384, 384, 24
    $region13: #{gru_rnn_forward.1} parent=1 // pred_fallthru
      _
    // Predicated region
    $region14: #{gru_rnn_forward.1} parent=1 // pred_check
      _
    $region15: #{gru_rnn_forward.1} parent=1 // pred_check_branch
      %36 = sbr.rel (0) target = $region17
    $region16: #{gru_rnn_forward.1} parent=1 // pred_region
      %38 = vsyncadd [#allocation5], 0
      %s39 = sshll.u32 %s3, 4
      %s40 = int_to_ptr.hbm [resolvable:$true] %s39
      %s41 = sshll.u32 [#allocation4], 4
      %s42 = int_to_ptr.vmem [resolvable:$true] %s41
      %47 = dma.hbm_to_vmem [thread:$0]  %s40, 4096, %s42, [#allocation5], 256, 256, 16
    $region17: #{gru_rnn_forward.1} parent=1 // pred_fallthru
      _
    // Predicated region
    $region18: #{gru_rnn_forward.1} parent=1 // pred_check
      _
    $region19: #{gru_rnn_forward.1} parent=1 // pred_check_branch
      %49 = sbr.rel (0) target = $region21
    $region20: #{gru_rnn_forward.1} parent=1 // pred_region
      %51 = vsyncadd [#allocation5], 0
      %s52 = sshll.u32 %s4, 4
      %s53 = int_to_ptr.hbm [resolvable:$true] %s52
      %s54 = sshll.u32 [#allocation6], 4
      %s55 = int_to_ptr.vmem [resolvable:$true] %s54
      %60 = dma.hbm_to_vmem [thread:$0]  %s53, 2048, %s55, [#allocation5], 128, 128, 8
    $region21: #{gru_rnn_forward.1} parent=1 // pred_fallthru
      _
    // Predicated region
    $region22: #{gru_rnn_forward.1} parent=1 // pred_check
      _
    $region23: #{gru_rnn_forward.1} parent=1 // pred_check_branch
      %62 = sbr.rel (0) target = $region25
    $region24: #{gru_rnn_forward.1} parent=1 // pred_region
      _
    $region25: #{gru_rnn_forward.1} parent=1 // pred_fallthru
      _
    // Predicated region
    $region26: #{gru_rnn_forward.1} parent=1 // pred_check
      _
    $region27: #{gru_rnn_forward.1} parent=1 // pred_check_branch
      %64 = sbr.rel (0) target = $region29
    $region28: #{gru_rnn_forward.1} parent=1 // pred_region
      %66 = vsyncadd [#allocation8], 0
      %s67 = sshll.u32 %s6, 4
      %s68 = int_to_ptr.hbm [resolvable:$true] %s67
      %s69 = sshll.u32 [#allocation7], 4
      %s70 = int_to_ptr.vmem [resolvable:$true] %s69
      %75 = dma.hbm_to_vmem [thread:$0]  %s68, 2048, %s70, [#allocation8], 128, 128, 8
    $region29: #{gru_rnn_forward.1} parent=1 // pred_fallthru
      _
    // Predicated region
    $region30: #{gru_rnn_forward.1} parent=1 // pred_check
      _
    $region31: #{gru_rnn_forward.1} parent=1 // pred_check_branch
      %77 = sbr.rel (0) target = $region33
    $region32: #{gru_rnn_forward.1} parent=1 // pred_region
      _
    $region33: #{gru_rnn_forward.1} parent=1 // pred_fallthru
      _
    // Predicated region
    $region34: #{gru_rnn_forward.1} parent=1 // pred_check
      _
    $region35: #{gru_rnn_forward.1} parent=1 // pred_check_branch
      %79 = sbr.rel (0) target = $region37
    $region36: #{gru_rnn_forward.1} parent=1 // pred_region
      %81 = dma.done [#allocation3], 6144
    $region37: #{gru_rnn_forward.1} parent=1 // pred_fallthru
      _
    // Predicated region
    $region38: #{gru_rnn_forward.1} parent=1 // pred_check
      _
    $region39: #{gru_rnn_forward.1} parent=1 // pred_check_branch
      %83 = sbr.rel (0) target = $region41
    $region40: #{gru_rnn_forward.1} parent=1 // pred_region
      %85 = dma.done [#allocation5], 4096
    $region41: #{gru_rnn_forward.1} parent=1 // pred_fallthru
      _
    // Predicated region
    $region42: #{gru_rnn_forward.1} parent=1 // pred_check
      _
    $region43: #{gru_rnn_forward.1} parent=1 // pred_check_branch
      %87 = sbr.rel (0) target = $region45
    $region44: #{gru_rnn_forward.1} parent=1 // pred_region
      %89 = dma.done [#allocation5], 2048
    $region45: #{gru_rnn_forward.1} parent=1 // pred_fallthru
      _
    // Predicated region
    $region46: #{gru_rnn_forward.1} parent=1 // pred_check
      _
    $region47: #{gru_rnn_forward.1} parent=1 // pred_check_branch
      %91 = sbr.rel (0) target = $region49
    $region48: #{gru_rnn_forward.1} parent=1 // pred_region
      %93 = dma.done [#allocation8], 2048
    $region49: #{gru_rnn_forward.1} parent=1 // pred_fallthru
      _
    %v94 = vld [vmem:[%s0] sm:$0xff]
    %v95 = vld [vmem:[%s1] sm:$0xff]
    %v96 = vld [vmem:[#allocation2] sm:$0xff]
    %v97 = vld [vmem:[#allocation2 + $0x8] sm:$0xff]
    %v98 = vld [vmem:[#allocation2 + $0x10] sm:$0xff]
    %v99 = vld [vmem:[#allocation2 + $0x18] sm:$0xff]
    %v100 = vld [vmem:[#allocation2 + $0x20] sm:$0xff]
    %v101 = vld [vmem:[#allocation2 + $0x28] sm:$0xff]
    %v102 = vld [vmem:[#allocation2 + $0x30] sm:$0xff]
    %v103 = vld [vmem:[#allocation2 + $0x38] sm:$0xff]
    %v104 = vld [vmem:[#allocation2 + $0x40] sm:$0xff]
    %v105 = vld [vmem:[#allocation2 + $0x48] sm:$0xff]
    %v106 = vld [vmem:[#allocation2 + $0x50] sm:$0xff]
    %v107 = vld [vmem:[#allocation2 + $0x58] sm:$0xff]
    %v108 = vld [vmem:[#allocation2 + $0x60] sm:$0xff]
    %v109 = vld [vmem:[#allocation2 + $0x68] sm:$0xff]
    %v110 = vld [vmem:[#allocation2 + $0x70] sm:$0xff]
    %v111 = vld [vmem:[#allocation2 + $0x78] sm:$0xff]
    %v112 = vld [vmem:[#allocation2 + $0x80] sm:$0xff]
    %v113 = vld [vmem:[#allocation2 + $0x88] sm:$0xff]
    %v114 = vld [vmem:[#allocation2 + $0x90] sm:$0xff]
    %v115 = vld [vmem:[#allocation2 + $0x98] sm:$0xff]
    %v116 = vld [vmem:[#allocation2 + $0xa0] sm:$0xff]
    %v117 = vld [vmem:[#allocation2 + $0xa8] sm:$0xff]
    %v118 = vld [vmem:[#allocation2 + $0xb0] sm:$0xff]
    %v119 = vld [vmem:[#allocation2 + $0xb8] sm:$0xff]
    %v120 = vld [vmem:[#allocation2 + $0xc0] sm:$0xff]
    %v121 = vld [vmem:[#allocation2 + $0xc8] sm:$0xff]
    %v122 = vld [vmem:[#allocation2 + $0xd0] sm:$0xff]
    %v123 = vld [vmem:[#allocation2 + $0xd8] sm:$0xff]
    %v124 = vld [vmem:[#allocation2 + $0xe0] sm:$0xff]
    %v125 = vld [vmem:[#allocation2 + $0xe8] sm:$0xff]
    %v126 = vld [vmem:[#allocation2 + $0xf0] sm:$0xff]
    %v127 = vld [vmem:[#allocation2 + $0xf8] sm:$0xff]
    %v128 = vld [vmem:[#allocation2 + $0x100] sm:$0xff]
    %v129 = vld [vmem:[#allocation2 + $0x108] sm:$0xff]
    %v130 = vld [vmem:[#allocation2 + $0x110] sm:$0xff]
    %v131 = vld [vmem:[#allocation2 + $0x118] sm:$0xff]
    %v132 = vld [vmem:[#allocation2 + $0x120] sm:$0xff]
    %v133 = vld [vmem:[#allocation2 + $0x128] sm:$0xff]
    %v134 = vld [vmem:[#allocation2 + $0x130] sm:$0xff]
    %v135 = vld [vmem:[#allocation2 + $0x138] sm:$0xff]
    %v136 = vld [vmem:[#allocation2 + $0x140] sm:$0xff]
    %v137 = vld [vmem:[#allocation2 + $0x148] sm:$0xff]
    %v138 = vld [vmem:[#allocation2 + $0x150] sm:$0xff]
    %v139 = vld [vmem:[#allocation2 + $0x158] sm:$0xff]
    %v140 = vld [vmem:[#allocation2 + $0x160] sm:$0xff]
    %v141 = vld [vmem:[#allocation2 + $0x168] sm:$0xff]
    %v142 = vld [vmem:[#allocation2 + $0x170] sm:$0xff]
    %v143 = vld [vmem:[#allocation2 + $0x178] sm:$0xff]
    %v144 = vld [vmem:[%s5] sm:$0x7]
    %v146 = vperm.slane %v144, 0
    %v147 = vperm.slane %v144, 1
    %v148 = vperm.slane %v144, 2
    %152 = vmatpush.msra.mxu0 %v141
    %153 = vmatpush.msra.mxu0 %v138
    %154 = vmatpush.msra.mxu0 %v135
    %155 = vmatpush.msra.mxu0 %v132
    %156 = vmatpush.msra.mxu0 %v129
    %157 = vmatpush.msra.mxu0 %v126
    %158 = vmatpush.msra.mxu0 %v123
    %159 = vmatpush.msra.mxu0 %v120
    %160 = vmatpush.msra.mxu0 %v117
    %161 = vmatpush.msra.mxu0 %v114
    %162 = vmatpush.msra.mxu0 %v111
    %163 = vmatpush.msra.mxu0 %v108
    %164 = vmatpush.msra.mxu0 %v105
    %165 = vmatpush.msra.mxu0 %v102
    %166 = vmatpush.msra.mxu0 %v99
    %167 = vmatpush.msra.mxu0 %v96
    %168 = vmatmul.f32.gmra.mxu0 %v94
    %v169 = vpop.f32.mrf.mxu0
    %v170 = vadd.f32 %v146, %v169
    %171 = vdwg.mxu0
    %172 = vmatpush.msra.mxu0 %v142
    %173 = vmatpush.msra.mxu0 %v139
    %174 = vmatpush.msra.mxu0 %v136
    %175 = vmatpush.msra.mxu0 %v133
    %176 = vmatpush.msra.mxu0 %v130
    %177 = vmatpush.msra.mxu0 %v127
    %178 = vmatpush.msra.mxu0 %v124
    %179 = vmatpush.msra.mxu0 %v121
    %180 = vmatpush.msra.mxu0 %v118
    %181 = vmatpush.msra.mxu0 %v115
    %182 = vmatpush.msra.mxu0 %v112
    %183 = vmatpush.msra.mxu0 %v109
    %184 = vmatpush.msra.mxu0 %v106
    %185 = vmatpush.msra.mxu0 %v103
    %186 = vmatpush.msra.mxu0 %v100
    %187 = vmatpush.msra.mxu0 %v97
    %188 = vmatmul.f32.gmra.mxu0 %v94
    %v189 = vpop.f32.mrf.mxu0
    %v190 = vadd.f32 %v147, %v189
    %191 = vdwg.mxu0
    %192 = vmatpush.msra.mxu0 %v143
    %193 = vmatpush.msra.mxu0 %v140
    %194 = vmatpush.msra.mxu0 %v137
    %195 = vmatpush.msra.mxu0 %v134
    %196 = vmatpush.msra.mxu0 %v131
    %197 = vmatpush.msra.mxu0 %v128
    %198 = vmatpush.msra.mxu0 %v125
    %199 = vmatpush.msra.mxu0 %v122
    %200 = vmatpush.msra.mxu0 %v119
    %201 = vmatpush.msra.mxu0 %v116
    %202 = vmatpush.msra.mxu0 %v113
    %203 = vmatpush.msra.mxu0 %v110
    %204 = vmatpush.msra.mxu0 %v107
    %205 = vmatpush.msra.mxu0 %v104
    %206 = vmatpush.msra.mxu0 %v101
    %207 = vmatpush.msra.mxu0 %v98
    %208 = vmatmul.f32.gmra.mxu0 %v94
    %v209 = vpop.f32.mrf.mxu0
    %v210 = vadd.f32 %v148, %v209
    %211 = vdwg.mxu0
    %v212 = vld [vmem:[#allocation4] sm:$0xff]
    %v213 = vld [vmem:[#allocation4 + $0x8] sm:$0xff]
    %v214 = vld [vmem:[#allocation4 + $0x10] sm:$0xff]
    %v215 = vld [vmem:[#allocation4 + $0x18] sm:$0xff]
    %v216 = vld [vmem:[#allocation4 + $0x20] sm:$0xff]
    %v217 = vld [vmem:[#allocation4 + $0x28] sm:$0xff]
    %v218 = vld [vmem:[#allocation4 + $0x30] sm:$0xff]
    %v219 = vld [vmem:[#allocation4 + $0x38] sm:$0xff]
    %v220 = vld [vmem:[#allocation4 + $0x40] sm:$0xff]
    %v221 = vld [vmem:[#allocation4 + $0x48] sm:$0xff]
    %v222 = vld [vmem:[#allocation4 + $0x50] sm:$0xff]
    %v223 = vld [vmem:[#allocation4 + $0x58] sm:$0xff]
    %v224 = vld [vmem:[#allocation4 + $0x60] sm:$0xff]
    %v225 = vld [vmem:[#allocation4 + $0x68] sm:$0xff]
    %v226 = vld [vmem:[#allocation4 + $0x70] sm:$0xff]
    %v227 = vld [vmem:[#allocation4 + $0x78] sm:$0xff]
    %v228 = vld [vmem:[#allocation4 + $0x80] sm:$0xff]
    %v229 = vld [vmem:[#allocation4 + $0x88] sm:$0xff]
    %v230 = vld [vmem:[#allocation4 + $0x90] sm:$0xff]
    %v231 = vld [vmem:[#allocation4 + $0x98] sm:$0xff]
    %v232 = vld [vmem:[#allocation4 + $0xa0] sm:$0xff]
    %v233 = vld [vmem:[#allocation4 + $0xa8] sm:$0xff]
    %v234 = vld [vmem:[#allocation4 + $0xb0] sm:$0xff]
    %v235 = vld [vmem:[#allocation4 + $0xb8] sm:$0xff]
    %v236 = vld [vmem:[#allocation4 + $0xc0] sm:$0xff]
    %v237 = vld [vmem:[#allocation4 + $0xc8] sm:$0xff]
    %v238 = vld [vmem:[#allocation4 + $0xd0] sm:$0xff]
    %v239 = vld [vmem:[#allocation4 + $0xd8] sm:$0xff]
    %v240 = vld [vmem:[#allocation4 + $0xe0] sm:$0xff]
    %v241 = vld [vmem:[#allocation4 + $0xe8] sm:$0xff]
    %v242 = vld [vmem:[#allocation4 + $0xf0] sm:$0xff]
    %v243 = vld [vmem:[#allocation4 + $0xf8] sm:$0xff]
    %244 = vmatpush.msra.mxu0 %v242
    %245 = vmatpush.msra.mxu0 %v240
    %246 = vmatpush.msra.mxu0 %v238
    %247 = vmatpush.msra.mxu0 %v236
    %248 = vmatpush.msra.mxu0 %v234
    %249 = vmatpush.msra.mxu0 %v232
    %250 = vmatpush.msra.mxu0 %v230
    %251 = vmatpush.msra.mxu0 %v228
    %252 = vmatpush.msra.mxu0 %v226
    %253 = vmatpush.msra.mxu0 %v224
    %254 = vmatpush.msra.mxu0 %v222
    %255 = vmatpush.msra.mxu0 %v220
    %256 = vmatpush.msra.mxu0 %v218
    %257 = vmatpush.msra.mxu0 %v216
    %258 = vmatpush.msra.mxu0 %v214
    %259 = vmatpush.msra.mxu0 %v212
    %260 = vmatmul.f32.gmra.mxu0 %v95
    %v261 = vpop.f32.mrf.mxu0
    %v262 = vadd.f32 0.0, %v261
    %263 = vdwg.mxu0
    %264 = vmatpush.msra.mxu0 %v243
    %265 = vmatpush.msra.mxu0 %v241
    %266 = vmatpush.msra.mxu0 %v239
    %267 = vmatpush.msra.mxu0 %v237
    %268 = vmatpush.msra.mxu0 %v235
    %269 = vmatpush.msra.mxu0 %v233
    %270 = vmatpush.msra.mxu0 %v231
    %271 = vmatpush.msra.mxu0 %v229
    %272 = vmatpush.msra.mxu0 %v227
    %273 = vmatpush.msra.mxu0 %v225
    %274 = vmatpush.msra.mxu0 %v223
    %275 = vmatpush.msra.mxu0 %v221
    %276 = vmatpush.msra.mxu0 %v219
    %277 = vmatpush.msra.mxu0 %v217
    %278 = vmatpush.msra.mxu0 %v215
    %279 = vmatpush.msra.mxu0 %v213
    %280 = vmatmul.f32.gmra.mxu0 %v95
    %v281 = vpop.f32.mrf.mxu0
    %v282 = vadd.f32 0.0, %v281
    %283 = vdwg.mxu0
    %v284 = vadd.f32 %v170, %v262
    %v285 = vmul.f32 %v284, 0.5
    %v286 = vtanh.pop %v285
    %v287 = vadd.f32 %v286, 1.0
    %v288 = vmul.f32 %v287, 0.5
    %v289 = vadd.f32 %v190, %v282
    %v290 = vmul.f32 %v289, 0.5
    %v291 = vtanh.pop %v290
    %v292 = vadd.f32 %v291, 1.0
    %v293 = vmul.f32 %v292, 0.5
    %v294 = vmul.f32 %v288, %v95
    %v295 = vld [vmem:[#allocation6] sm:$0xff]
    %v296 = vld [vmem:[#allocation6 + $0x8] sm:$0xff]
    %v297 = vld [vmem:[#allocation6 + $0x10] sm:$0xff]
    %v298 = vld [vmem:[#allocation6 + $0x18] sm:$0xff]
    %v299 = vld [vmem:[#allocation6 + $0x20] sm:$0xff]
    %v300 = vld [vmem:[#allocation6 + $0x28] sm:$0xff]
    %v301 = vld [vmem:[#allocation6 + $0x30] sm:$0xff]
    %v302 = vld [vmem:[#allocation6 + $0x38] sm:$0xff]
    %v303 = vld [vmem:[#allocation6 + $0x40] sm:$0xff]
    %v304 = vld [vmem:[#allocation6 + $0x48] sm:$0xff]
    %v305 = vld [vmem:[#allocation6 + $0x50] sm:$0xff]
    %v306 = vld [vmem:[#allocation6 + $0x58] sm:$0xff]
    %v307 = vld [vmem:[#allocation6 + $0x60] sm:$0xff]
    %v308 = vld [vmem:[#allocation6 + $0x68] sm:$0xff]
    %v309 = vld [vmem:[#allocation6 + $0x70] sm:$0xff]
    %v310 = vld [vmem:[#allocation6 + $0x78] sm:$0xff]
    %311 = vmatpush.msra.mxu0 %v310
    %312 = vmatpush.msra.mxu0 %v309
    %313 = vmatpush.msra.mxu0 %v308
    %314 = vmatpush.msra.mxu0 %v307
    %315 = vmatpush.msra.mxu0 %v306
    %316 = vmatpush.msra.mxu0 %v305
    %317 = vmatpush.msra.mxu0 %v304
    %318 = vmatpush.msra.mxu0 %v303
    %319 = vmatpush.msra.mxu0 %v302
    %320 = vmatpush.msra.mxu0 %v301
    %321 = vmatpush.msra.mxu0 %v300
    %322 = vmatpush.msra.mxu0 %v299
    %323 = vmatpush.msra.mxu0 %v298
    %324 = vmatpush.msra.mxu0 %v297
    %325 = vmatpush.msra.mxu0 %v296
    %326 = vmatpush.msra.mxu0 %v295
    %327 = vmatmul.f32.gmra.mxu0 %v294
    %v328 = vpop.f32.mrf.mxu0
    %v329 = vadd.f32 0.0, %v328
    %330 = vdwg.mxu0
    %v331 = vadd.f32 %v210, %v329
    %v332 = vtanh.pop %v331
    %v333 = vsub.f32 1.0, %v293
    %v334 = vmul.f32 %v333, %v332
    %v335 = vmul.f32 %v293, %v95
    %v336 = vadd.f32 %v334, %v335
    %337 = vst [vmem:[%s9] sm:$0xff] %v336
    %v338 = vld [vmem:[#allocation7] sm:$0xff]
    %v339 = vld [vmem:[#allocation7 + $0x8] sm:$0xff]
    %v340 = vld [vmem:[#allocation7 + $0x10] sm:$0xff]
    %v341 = vld [vmem:[#allocation7 + $0x18] sm:$0xff]
    %v342 = vld [vmem:[#allocation7 + $0x20] sm:$0xff]
    %v343 = vld [vmem:[#allocation7 + $0x28] sm:$0xff]
    %v344 = vld [vmem:[#allocation7 + $0x30] sm:$0xff]
    %v345 = vld [vmem:[#allocation7 + $0x38] sm:$0xff]
    %v346 = vld [vmem:[#allocation7 + $0x40] sm:$0xff]
    %v347 = vld [vmem:[#allocation7 + $0x48] sm:$0xff]
    %v348 = vld [vmem:[#allocation7 + $0x50] sm:$0xff]
    %v349 = vld [vmem:[#allocation7 + $0x58] sm:$0xff]
    %v350 = vld [vmem:[#allocation7 + $0x60] sm:$0xff]
    %v351 = vld [vmem:[#allocation7 + $0x68] sm:$0xff]
    %v352 = vld [vmem:[#allocation7 + $0x70] sm:$0xff]
    %v353 = vld [vmem:[#allocation7 + $0x78] sm:$0xff]
    %v354 = vld [vmem:[%s7] sm:$0x1]
    %v356 = vperm.slane %v354, 0
    %358 = vmatpush.msra.mxu0 %v353
    %359 = vmatpush.msra.mxu0 %v352
    %360 = vmatpush.msra.mxu0 %v351
    %361 = vmatpush.msra.mxu0 %v350
    %362 = vmatpush.msra.mxu0 %v349
    %363 = vmatpush.msra.mxu0 %v348
    %364 = vmatpush.msra.mxu0 %v347
    %365 = vmatpush.msra.mxu0 %v346
    %366 = vmatpush.msra.mxu0 %v345
    %367 = vmatpush.msra.mxu0 %v344
    %368 = vmatpush.msra.mxu0 %v343
    %369 = vmatpush.msra.mxu0 %v342
    %370 = vmatpush.msra.mxu0 %v341
    %371 = vmatpush.msra.mxu0 %v340
    %372 = vmatpush.msra.mxu0 %v339
    %373 = vmatpush.msra.mxu0 %v338
    %374 = vmatmul.f32.gmra.mxu0 %v336
    %v375 = vpop.f32.mrf.mxu0
    %v376 = vadd.f32 %v356, %v375
    %377 = vdwg.mxu0
    %378 = vst [vmem:[%s8] sm:$0xff] %v376
    // Predicated region
    $region50: #{gru_rnn_forward.1} parent=1 // pred_check
      _
    $region51: #{gru_rnn_forward.1} parent=1 // pred_check_branch
      %380 = sbr.rel (0) target = $region53
    $region52: #{gru_rnn_forward.1} parent=1 // pred_region
      _
    $region53: #{gru_rnn_forward.1} parent=1 // pred_fallthru
      _
    // Predicated region
    $region54: #{gru_rnn_forward.1} parent=1 // pred_check
      _
    $region55: #{gru_rnn_forward.1} parent=1 // pred_check_branch
      %382 = sbr.rel (0) target = $region57
    $region56: #{gru_rnn_forward.1} parent=1 // pred_region
      _
    $region57: #{gru_rnn_forward.1} parent=1 // pred_fallthru
      _
    // Predicated region
    $region58: #{gru_rnn_forward.1} parent=1 // pred_check
      _
    $region59: #{gru_rnn_forward.1} parent=1 // pred_check_branch
      %384 = sbr.rel (0) target = $region61
    $region60: #{gru_rnn_forward.1} parent=1 // pred_region
      _
    $region61: #{gru_rnn_forward.1} parent=1 // pred_fallthru
      _
    // Predicated region
    $region62: #{gru_rnn_forward.1} parent=1 // pred_check
      _
    $region63: #{gru_rnn_forward.1} parent=1 // pred_check_branch
      %386 = sbr.rel (0) target = $region65
    $region64: #{gru_rnn_forward.1} parent=1 // pred_region
      _
    $region65: #{gru_rnn_forward.1} parent=1 // pred_fallthru
      _
    %387 = vsyncpa [#allocation3], 1
    %388 = vsyncpa [#allocation5], 1
    %389 = vsyncpa [#allocation8], 1

</llo_original>
